<compile_context>
chip_gen: v7x
topology: tpu7x:2x2x1
jax: 0.10.0
libtpu: 0.0.40
codegen_flags: <defaults>
</compile_context>

<pallas_src>
import math
from functools import partial

import jax
import jax.numpy as jnp
from jax.experimental import pallas as pl
from jax.experimental.pallas import tpu as pltpu


# ------------------------------------------------------------------
# Kernels
# ------------------------------------------------------------------
def _make_unmasked_kernel(rows_f, tr, steps_per_core, need_tail_mask):
    """Un-masked path. Denominator (numel) is static and applied in the wrapper."""

    def kernel(pred_ref, y_ref, w_ref, sse_ref, acc_ref):
        c = pl.program_id(0)          # parallel (per-TensorCore) axis
        j = pl.program_id(1)          # reduction axis

        @pl.when(j == 0)
        def _():
            acc_ref[...] = jnp.zeros_like(acc_ref)

        diff = pred_ref[...].astype(jnp.float32) - y_ref[...].astype(jnp.float32)
        x = diff * diff * w_ref[...]
        if need_tail_mask:  # static: only emitted when the tiling has a ragged tail
            row = (c * steps_per_core + j) * tr + jax.lax.broadcasted_iota(
                jnp.int32, x.shape, 0)
            x = jnp.where(row < rows_f, x, 0.0)
        # Sublane-only reduce in the hot loop (mostly VALU vreg adds, hidden under DMA).
        acc_ref[...] += jnp.sum(x, axis=0, keepdims=True)

        @pl.when(j == steps_per_core - 1)
        def _():
            # Single cross-lane reduce, once per core.
            sse_ref[...] = jnp.sum(acc_ref[...], axis=1, keepdims=True)

    return kernel


def _make_masked_kernel(rows_f, tr, steps_per_core, need_tail_mask):
    """Masked path. mask.sum() is fused as a second accumulator (full-size mask case)."""

    def kernel(pred_ref, y_ref, w_ref, mask_ref, sse_ref, msum_ref, acc_ref, macc_ref):
        c = pl.program_id(0)
        j = pl.program_id(1)

        @pl.when(j == 0)
        def _():
            acc_ref[...] = jnp.zeros_like(acc_ref)
            macc_ref[...] = jnp.zeros_like(macc_ref)

        diff = pred_ref[...].astype(jnp.float32) - y_ref[...].astype(jnp.float32)
        m = mask_ref[...].astype(jnp.float32)
        x = diff * diff * w_ref[...] * m
        if need_tail_mask:
            row = (c * steps_per_core + j) * tr + jax.lax.broadcasted_iota(
                jnp.int32, x.shape, 0)
            valid = row < rows_f
            x = jnp.where(valid, x, 0.0)
            m = jnp.where(valid, m, 0.0)
        acc_ref[...] += jnp.sum(x, axis=0, keepdims=True)
        macc_ref[...] += jnp.sum(m, axis=0, keepdims=True)

        @pl.when(j == steps_per_core - 1)
        def _():
            sse_ref[...] = jnp.sum(acc_ref[...], axis=1, keepdims=True)
            msum_ref[...] = jnp.sum(macc_ref[...], axis=1, keepdims=True)

    return kernel


# ------------------------------------------------------------------
# Wrapper
# ------------------------------------------------------------------
@partial(jax.jit, static_argnames=("deg2rad", "target_block_bytes"))
def llweighted_rmse(pred, y, mask=None, *, deg2rad=True,
                    target_block_bytes=2 * 1024 * 1024):
    """Forward of LLweighted_RMSELoss_Climax as one fused Pallas TPU call."""
    assert pred.shape == y.shape, (pred.shape, y.shape)
    w_dim = int(y.shape[-1])
    n_total = int(pred.size)
    n_rows = n_total // w_dim

    # Latitude weights depend only on static W -> XLA constant-folds this block.
    idx = jnp.arange(w_dim, dtype=jnp.float32)
    w = jnp.cos(jnp.pi * idx / 180.0) if deg2rad else jnp.cos(idx)
    w = w / jnp.mean(w)

    # Lane folding: pack consecutive latitude rows so the lane width is a multiple of 128
    # (full vregs, unmasked vld/vst). Only when the fold divides the row count, so the
    # reshape below stays a free row-major reinterpretation (no copy).
    fold = 1
    if w_dim % 128 != 0:
        f = math.lcm(w_dim, 128) // w_dim
        if n_rows % f == 0:
            fold = f
    lane_w = w_dim * fold
    rows_f = n_rows // fold
    w_lane = jnp.tile(w.reshape(1, w_dim), (1, fold)) if fold > 1 else w.reshape(1, w_dim)

    # Byte-sized row tiles: ~target_block_bytes per streamed input per grid step.
    itemsize = jnp.dtype(pred.dtype).itemsize
    ALIGN = 32  # covers f32 (8) / bf16 (16) / int8-bool (32) sublane tiling
    tr = (int(target_block_bytes) // (lane_w * itemsize)) // ALIGN * ALIGN
    tr = max(tr, ALIGN)
    if tr >= rows_f:
        tr = rows_f                         # single full-extent row tile
    n_tiles = -(-rows_f // tr)              # in-bounds row tiles
    num_cores = 2 if n_tiles >= 2 else 1    # 2-way split uses both TCs on v7x; no-op on v5e/v6e
    steps = -(-n_tiles // num_cores)        # reduction steps per core
    need_tail = (num_cores * steps * tr != rows_f)

    if num_cores * steps == n_tiles:
        row_block = lambda c, j: (c * steps + j, 0)
    else:
        # Clamp so no block start is out of bounds; the duplicated / partial tile is
        # excluded by the in-kernel row mask (need_tail is True in this case).
        row_block = lambda c, j: (jnp.minimum(c * steps + j, n_tiles - 1), 0)

    row_spec = pl.BlockSpec((tr, lane_w), row_block)
    w_spec = pl.BlockSpec((1, lane_w), lambda c, j: (0, 0))
    out_spec = pl.BlockSpec((1, 1), lambda c, j: (c, 0))
    out_sds = jax.ShapeDtypeStruct((num_cores, 1), jnp.float32)
    grid = (num_cores, steps)
    cparams = pltpu.CompilerParams(dimension_semantics=("parallel", "arbitrary"))

    # Free reshapes (row-major reinterpretation); inputs stay in their native dtype.
    p2 = pred.reshape(rows_f, lane_w)
    y2 = y.reshape(rows_f, lane_w)

    if mask is None:
        kernel = _make_unmasked_kernel(rows_f, tr, steps, need_tail)
        sse = pl.pallas_call(
            kernel,
            out_shape=out_sds,
            grid=grid,
            in_specs=[row_spec, row_spec, w_spec],
            out_specs=out_spec,
            scratch_shapes=[pltpu.VMEM((1, lane_w), jnp.float32)],
            compiler_params=cparams,
            cost_estimate=pl.CostEstimate(
                flops=5 * n_total, transcendentals=0,
                bytes_accessed=pred.nbytes + y.nbytes + 4 * lane_w + 4 * num_cores),
        )(p2, y2, w_lane)
        return jnp.sqrt(jnp.sum(sse) / n_total)

    # ---- masked path ----
    full_mask = (mask.shape == pred.shape)
    if mask.dtype == jnp.bool_:
        mask = mask.astype(jnp.bfloat16)    # exact for 0/1; upcast to f32 in-kernel
    mask_b = mask if full_mask else jnp.broadcast_to(mask, pred.shape)
    # TODO(synk): for broadcast masks, feed the un-broadcast mask through its own
    # BlockSpec index_map (block 0 along broadcast dims) instead of materializing it.
    m2 = mask_b.reshape(rows_f, lane_w)

    kernel = _make_masked_kernel(rows_f, tr, steps, need_tail)
    sse, msum = pl.pallas_call(
        kernel,
        out_shape=(out_sds, out_sds),
        grid=grid,
        in_specs=[row_spec, row_spec, w_spec, row_spec],
        out_specs=(out_spec, out_spec),
        scratch_shapes=[pltpu.VMEM((1, lane_w), jnp.float32),
                        pltpu.VMEM((1, lane_w), jnp.float32)],
        compiler_params=cparams,
        cost_estimate=pl.CostEstimate(
            flops=7 * n_total, transcendentals=0,
            bytes_accessed=pred.nbytes + y.nbytes + m2.nbytes
            + 4 * lane_w + 8 * num_cores),
    )(p2, y2, w_lane, m2)

    # Reference normalizes by the UN-broadcast mask sum: fused in-kernel only when the
    # mask is full-size; otherwise computed from the small un-broadcast mask here.
    denom = jnp.sum(msum) if full_mask else jnp.sum(mask.astype(jnp.float32))
    return jnp.sqrt(jnp.sum(sse) / denom)


# ------------------------------------------------------------------
# Pure-JAX reference for verification
# ------------------------------------------------------------------
def llweighted_rmse_ref(pred, y, mask=None, deg2rad=True):
    mse = (pred.astype(jnp.float32) - y.astype(jnp.float32)) ** 2
    w_dim = y.shape[-1]
    idx = jnp.arange(w_dim, dtype=jnp.float32)
    w = jnp.cos(jnp.pi * idx / 180.0) if deg2rad else jnp.cos(idx)
    w = w / jnp.mean(w)
    if mask is not None:
        err = jnp.sum(mse * w * mask.astype(jnp.float32)) / jnp.sum(mask.astype(jnp.float32))
    else:
        err = jnp.mean(mse * w)
    return jnp.sqrt(err)


if __name__ == "__main__":
    key = jax.random.PRNGKey(0)
    k0, k1, k2, k3, k4 = jax.random.split(key, 5)

    # 1) small ClimaX-like shape (batch, variables, height, latitude); W=16 -> lane fold 8
    B, V, H, W = 2, 4, 16, 16
    pred = jax.random.normal(k0, (B, V, H, W), dtype=jnp.float32)
    y = jax.random.normal(k1, (B, V, H, W), dtype=jnp.float32)
    out1 = jax.block_until_ready(llweighted_rmse(pred, y))
    ref1 = llweighted_rmse_ref(pred, y)
    assert jnp.allclose(out1, ref1, rtol=1e-5, atol=1e-5), (out1, ref1)

    # 2) masked path (full-size mask, fused in-kernel mask sum)
    mask = (jax.random.uniform(k2, (B, V, H, W)) > 0.3).astype(jnp.float32)
    out2 = jax.block_until_ready(llweighted_rmse(pred, y, mask=mask))
    ref2 = llweighted_rmse_ref(pred, y, mask=mask)
    assert jnp.allclose(out2, ref2, rtol=1e-5, atol=1e-5), (out2, ref2)

    # 3) multi-tile grid + 2-way core split + ragged tail (rows=520, tile=32 -> 17 tiles)
    B2, V2, H2, W2 = 2, 4, 65, 128
    p3 = jax.random.normal(k3, (B2, V2, H2, W2), dtype=jnp.float32)
    y3 = jax.random.normal(k4, (B2, V2, H2, W2), dtype=jnp.float32)
    out3 = jax.block_until_ready(llweighted_rmse(p3, y3, target_block_bytes=32 * 128 * 4))
    ref3 = llweighted_rmse_ref(p3, y3)
    assert jnp.allclose(out3, ref3, rtol=1e-5, atol=1e-5), (out3, ref3)

    # 4) masked + multi-tile + ragged tail
    m3 = (jax.random.uniform(k2, (B2, V2, H2, W2)) > 0.5).astype(jnp.float32)
    out4 = jax.block_until_ready(
        llweighted_rmse(p3, y3, mask=m3, target_block_bytes=32 * 128 * 4))
    ref4 = llweighted_rmse_ref(p3, y3, mask=m3)
    assert jnp.allclose(out4, ref4, rtol=1e-5, atol=1e-5), (out4, ref4)

    # 5) bf16 inputs streamed natively (upcast in-kernel, math in f32)
    pb, yb = pred.astype(jnp.bfloat16), y.astype(jnp.bfloat16)
    out5 = jax.block_until_ready(llweighted_rmse(pb, yb))
    ref5 = llweighted_rmse_ref(pb.astype(jnp.float32), yb.astype(jnp.float32))
    assert jnp.allclose(out5, ref5, rtol=1e-3, atol=1e-3), (out5, ref5)

    print("KERNEL_OK")
</pallas_src>

<mosaic_0001>
module attributes {stable_mosaic.version = 11 : i64} {
  func.func @kernel(%arg0: i32, %arg1: i32, %arg2: memref<16x128xf32, #tpu.memory_space<vmem>>, %arg3: memref<16x128xf32, #tpu.memory_space<vmem>>, %arg4: memref<1x128xf32, #tpu.memory_space<vmem>>, %arg5: memref<1x1xf32, #tpu.memory_space<vmem>>, %arg6: memref<1x128xf32, #tpu.memory_space<vmem>>) attributes {dimension_semantics = [#tpu.dimension_semantics<parallel>, #tpu.dimension_semantics<arbitrary>], iteration_bounds = array<i64: 1, 1>, scalar_prefetch = 0 : i64, scratch_operands = 1 : i64, tpu.core_type = #tpu.core_type<tc>, window_params = [{transform_indices = @transform_0, window_bounds = array<i64: 16, 128>}, {transform_indices = @transform_1, window_bounds = array<i64: 16, 128>}, {pipeline_mode = #tpu.pipeline_mode<synchronous>, transform_indices = @transform_2, window_bounds = array<i64: 1, 128>}, {transform_indices = @transform_3, window_bounds = array<i64: 1, 1>}]} {
    %c0_i32 = arith.constant 0 : i32
    %0 = arith.cmpi eq, %arg1, %c0_i32 : i32
    %1 = arith.extui %0 : i1 to i32
    %c0_i32_0 = arith.constant 0 : i32
    %2 = arith.cmpi ne, %1, %c0_i32_0 : i32
    scf.if %2 {
      %cst_12 = arith.constant 0.000000e+00 : f32
      %18 = vector.broadcast %cst_12 : f32 to vector<1x128xf32>
      %c0_13 = arith.constant 0 : index
      %c0_14 = arith.constant 0 : index
      %19 = vector.load %arg6[%c0_13, %c0_14] : memref<1x128xf32, #tpu.memory_space<vmem>>, vector<1x128xf32>
      tpu.vector_store %arg6[%c0_13, %c0_14], %18 {strides = array<i32>} : memref<1x128xf32, #tpu.memory_space<vmem>>, vector<1x128xf32>,
    } else {
    }
    %c0 = arith.constant 0 : index
    %c0_1 = arith.constant 0 : index
    %3 = vector.load %arg2[%c0, %c0_1] : memref<16x128xf32, #tpu.memory_space<vmem>>, vector<16x128xf32>
    %c0_2 = arith.constant 0 : index
    %c0_3 = arith.constant 0 : index
    %4 = vector.load %arg3[%c0_2, %c0_3] : memref<16x128xf32, #tpu.memory_space<vmem>>, vector<16x128xf32>
    %5 = arith.subf %3, %4 : vector<16x128xf32>
    %6 = arith.mulf %5, %5 : vector<16x128xf32>
    %c0_4 = arith.constant 0 : index
    %c0_5 = arith.constant 0 : index
    %7 = vector.load %arg4[%c0_4, %c0_5] : memref<1x128xf32, #tpu.memory_space<vmem>>, vector<1x128xf32>
    %8 = vector.broadcast %7 : vector<1x128xf32> to vector<16x128xf32>
    %9 = arith.mulf %6, %8 : vector<16x128xf32>
    %c0_6 = arith.constant 0 : index
    %c0_7 = arith.constant 0 : index
    %10 = vector.load %arg6[%c0_6, %c0_7] : memref<1x128xf32, #tpu.memory_space<vmem>>, vector<1x128xf32>
    %cst = arith.constant dense<0.000000e+00> : vector<128xf32>
    %11 = vector.multi_reduction <add>, %9, %cst [0] : vector<16x128xf32> to vector<128xf32>
    %12 = vector.shape_cast %11 : vector<128xf32> to vector<1x128xf32>
    %13 = arith.addf %10, %12 : vector<1x128xf32>
    %c0_8 = arith.constant 0 : index
    %c0_9 = arith.constant 0 : index
    %14 = vector.load %arg6[%c0_8, %c0_9] : memref<1x128xf32, #tpu.memory_space<vmem>>, vector<1x128xf32>
    tpu.vector_store %arg6[%c0_8, %c0_9], %13 {strides = array<i32>} : memref<1x128xf32, #tpu.memory_space<vmem>>, vector<1x128xf32>,
    %c0_i32_10 = arith.constant 0 : i32
    %15 = arith.cmpi eq, %arg1, %c0_i32_10 : i32
    %16 = arith.extui %15 : i1 to i32
    %c0_i32_11 = arith.constant 0 : i32
    %17 = arith.cmpi ne, %16, %c0_i32_11 : i32
    scf.if %17 {
      %c0_12 = arith.constant 0 : index
      %c0_13 = arith.constant 0 : index
      %18 = vector.load %arg6[%c0_12, %c0_13] : memref<1x128xf32, #tpu.memory_space<vmem>>, vector<1x128xf32>
      %cst_14 = arith.constant dense<0.000000e+00> : vector<1xf32>
      %19 = vector.multi_reduction <add>, %18, %cst_14 [1] : vector<1x128xf32> to vector<1xf32>
      %20 = vector.shape_cast %19 : vector<1xf32> to vector<1x1xf32>
      %c0_15 = arith.constant 0 : index
      %c0_16 = arith.constant 0 : index
      %21 = vector.load %arg5[%c0_15, %c0_16] : memref<1x1xf32, #tpu.memory_space<vmem>>, vector<1x1xf32>
      tpu.vector_store %arg5[%c0_15, %c0_16], %20 {strides = array<i32>} : memref<1x1xf32, #tpu.memory_space<vmem>>, vector<1x1xf32>,
    } else {
    }
    return
  }
  func.func @transform_0(%arg0: i32, %arg1: i32) -> (i32, i32) {
    %c1_i32 = arith.constant 1 : i32
    %0 = arith.muli %arg0, %c1_i32 : i32
    %1 = arith.addi %0, %arg1 : i32
    %c0_i32 = arith.constant 0 : i32
    %c0_i32_0 = arith.constant 0 : i32
    return %1, %c0_i32 : i32, i32
  }
  func.func @transform_1(%arg0: i32, %arg1: i32) -> (i32, i32) {
    %c1_i32 = arith.constant 1 : i32
    %0 = arith.muli %arg0, %c1_i32 : i32
    %1 = arith.addi %0, %arg1 : i32
    %c0_i32 = arith.constant 0 : i32
    %c0_i32_0 = arith.constant 0 : i32
    return %1, %c0_i32 : i32, i32
  }
  func.func @transform_2(%arg0: i32, %arg1: i32) -> (i32, i32) {
    %c0_i32 = arith.constant 0 : i32
    %c0_i32_0 = arith.constant 0 : i32
    %c0_i32_1 = arith.constant 0 : i32
    return %c0_i32, %c0_i32_0 : i32, i32
  }
  func.func @transform_3(%arg0: i32, %arg1: i32) -> (i32, i32) {
    %c0_i32 = arith.constant 0 : i32
    %c0_i32_0 = arith.constant 0 : i32
    return %arg0, %c0_i32 : i32, i32
  }
}

</mosaic_0001>

<llo_original>
// kernel: llweighted_rmse.1
$region0: #{llweighted_rmse.1}
  #allocation0 [shape = 'u32[]', space=smem, size = 0x4, offset = 0x4, fixed_abs, tag = 'smem constant byte address 0x4 - core index']
  #allocation1 [shape = 'u32[144,128]{1,0:T(1,128)}', space=vmem, size = 0x12000, scoped, tag = 'internal scratch']
  #allocation2 [shape = 'f32[1,128]{1,0:T(1,128)}', space=vmem, size = 0x200, scoped, tag = 'scratch operand']
  %s0 = inlined_call_operand.vmem [shape: f32[16,128], index: 0, kind: input, shape index: {}]
  %s1 = inlined_call_operand.vmem [shape: f32[16,128], index: 1, kind: input, shape index: {}]
  %s2 = inlined_call_operand.vmem [shape: f32[1,128], index: 2, kind: input, shape index: {}]
  %s3 = inlined_call_operand.hbm [shape: f32[1,1], index: 3, kind: output, shape index: {}]
  %s4 = sld [smem:[#allocation0]]
  $region30: #{llweighted_rmse.1} parent=0
    _
  %s6 = ssub.s32 1, %s4
  %s7 = scalar_select 0, %s6, %s4
  $region1: #{llweighted_rmse.1} parent=0
    #allocation3 [shape = 'u8[512]{0}', space=vmem, size = 0x400, scoped, tag = 'output window, operand 0, single buffered']
    #allocation4 [shape = 's32[1]{0}', space=sflag, size = 0x4, scoped, tag = 'scoped memory for llweighted_rmse.1']
    %8 = vsyncpa [#allocation4], 0
    // Predicated region
    $region2: #{llweighted_rmse.1} parent=1 // pred_check
      _
    $region3: #{llweighted_rmse.1} parent=1 // pred_check_branch
      %10 = sbr.rel (0) target = $region5
    $region4: #{llweighted_rmse.1} parent=1 // pred_region
      %s11 = sadd.s32 0, 0
      %s12 = smul.u32 2, %s11
      %p13 = scmp.lt.s32.totalorder %s12, 1
      %s14 = scalar_select %p13, %s12, 1
      %s15 = smul.addr %s14, 8
      %s16 = scalar_lea.vmem %s0, %s15
      %s17 = sadd.s32 0, 0
      %s18 = smul.u32 2, %s17
    $region5: #{llweighted_rmse.1} parent=1 // pred_fallthru
      _
    // Predicated region
    $region6: #{llweighted_rmse.1} parent=1 // pred_check
      _
    $region7: #{llweighted_rmse.1} parent=1 // pred_check_branch
      %20 = sbr.rel (0) target = $region9
    $region8: #{llweighted_rmse.1} parent=1 // pred_region
      %s21 = sadd.s32 0, 0
      %s22 = smul.u32 2, %s21
      %p23 = scmp.lt.s32.totalorder %s22, 1
      %s24 = scalar_select %p23, %s22, 1
      %s25 = smul.addr %s24, 8
      %s26 = scalar_lea.vmem %s1, %s25
      %s27 = sadd.s32 0, 0
      %s28 = smul.u32 2, %s27
    $region9: #{llweighted_rmse.1} parent=1 // pred_fallthru
      _
    // Predicated region
    $region10: #{llweighted_rmse.1} parent=1 // pred_check
      _
    $region11: #{llweighted_rmse.1} parent=1 // pred_check_branch
      %30 = sbr.rel (0) target = $region13
    $region12: #{llweighted_rmse.1} parent=1 // pred_region
      _
    $region13: #{llweighted_rmse.1} parent=1 // pred_fallthru
      _
    %s31 = sadd.s32 0, 0
    %s32 = smul.u32 2, %s31
    %p33 = scmp.lt.s32.totalorder %s32, 1
    %s34 = scalar_select %p33, %s32, 1
    %s35 = smul.addr %s34, 8
    %s36 = scalar_lea.vmem %s0, %s35
    %s37 = sadd.s32 0, 0
    %s38 = smul.u32 2, %s37
    %p39 = scmp.lt.s32.totalorder %s38, 1
    %s40 = scalar_select %p39, %s38, 1
    %s41 = smul.addr %s40, 8
    %s42 = scalar_lea.vmem %s1, %s41
    %s43 = sadd.s32 0, 0
    %s44 = smul.u32 2, %s43
    %p45 = scmp.lt.s32.totalorder %s44, 1
    %s46 = scalar_select %p45, %s44, 1
    %s47 = smul.addr %s46, 8
    %s48 = scalar_lea.vmem %s0, %s47
    %s49 = sadd.s32 0, 0
    %s50 = smul.u32 2, %s49
    %s51 = sadd.s32 0, 0
    %s52 = smul.u32 2, %s51
    %p53 = scmp.lt.s32.totalorder %s52, 1
    %s54 = scalar_select %p53, %s52, 1
    %s55 = smul.addr %s54, 8
    %s56 = scalar_lea.vmem %s1, %s55
    %s57 = sadd.s32 0, 0
    %s58 = smul.u32 2, %s57
    %p59 = scmp.eq.s32.totalorder 0, 0
    // Predicated region
    $region14: #{llweighted_rmse.1} parent=1 // pred_check
      %p60 = pneg %p59
    $region15: #{llweighted_rmse.1} parent=1 // pred_check_branch
      %62 = sbr.rel (%p60) target = $region17
    $region16: #{llweighted_rmse.1} parent=1 // pred_region
      %63 = vst [vmem:[#allocation2] sm:$0x1] 0.0
    $region17: #{llweighted_rmse.1} parent=1 // pred_fallthru
      _
    %v64 = vld [vmem:[%s48] sm:$0xff]
    %v65 = vld [vmem:[%s48 + $0x8] sm:$0xff]
    %v66 = vld [vmem:[%s56] sm:$0xff]
    %v67 = vld [vmem:[%s56 + $0x8] sm:$0xff]
    %v68 = vsub.f32 %v64, %v66
    %v69 = vsub.f32 %v65, %v67
    %v70 = vmul.f32 %v68, %v68
    %v71 = vmul.f32 %v69, %v69
    %v72 = vld [vmem:[%s2] sm:$0x1]
    %v74 = vlaneseq
    %v75 = vshrl.u32 %v74, 7
    %v76 = vsub.s32 0, %v75
    %v77 = vrot.slane %v72, %v76
    %v79 = vmul.f32 %v70, %v77
    %v80 = vmul.f32 %v71, %v77
    %v81 = vld [vmem:[#allocation2] sm:$0x1]
    %v82 = vadd.f32 %v79, %v80
    %v83 = vrot.slane %v82, 4
    %v84 = vadd.f32 %v82, %v83
    %v85 = vrot.slane %v84, 2
    %v86 = vadd.f32 %v84, %v85
    %v87 = vrot.slane %v86, 1
    %v88 = vadd.f32 %v86, %v87
    %v89 = vadd.f32 %v81, %v88
    %90 = vst [vmem:[#allocation2] sm:$0x1] %v89
    // Predicated region
    $region18: #{llweighted_rmse.1} parent=1 // pred_check
      %p91 = pneg %p59
    $region19: #{llweighted_rmse.1} parent=1 // pred_check_branch
      %93 = sbr.rel (%p91) target = $region21
    $region20: #{llweighted_rmse.1} parent=1 // pred_region
      %v94 = vld [vmem:[#allocation2] sm:$0x1]
      %vm95 = vcmask 1040384
      %v96 = vsel %vm95, %v94, 0.0
      %97 = vadd.xlane.f32.xlu0 %v96
      %v98 = vpop.xlane.xlu0 %97
      %vm99 = vcmask 0
      %100 = vst.msk [vmem:[#allocation3] sm:$0x1] %vm99, %v98
    $region21: #{llweighted_rmse.1} parent=1 // pred_fallthru
      _
    // Predicated region
    $region22: #{llweighted_rmse.1} parent=1 // pred_check
      _
    $region23: #{llweighted_rmse.1} parent=1 // pred_check_branch
      %102 = sbr.rel (0) target = $region25
    $region24: #{llweighted_rmse.1} parent=1 // pred_region
      %s104 = ssub.s32 16, 16
      %105 = vsyncadd [#allocation4], %s104
      %s107 = sshll.u32 [#allocation3], 4
      %s108 = int_to_ptr.vmem [resolvable:$true] %s107
      %110 = dma.vmem_to_hbm [thread:$0]  %s108, 16, %s3, [#allocation4]
    $region25: #{llweighted_rmse.1} parent=1 // pred_fallthru
      _
    // Predicated region
    $region26: #{llweighted_rmse.1} parent=1 // pred_check
      _
    $region27: #{llweighted_rmse.1} parent=1 // pred_check_branch
      %112 = sbr.rel (0) target = $region29
    $region28: #{llweighted_rmse.1} parent=1 // pred_region
      %113 = dma.done [#allocation4], 16
    $region29: #{llweighted_rmse.1} parent=1 // pred_fallthru
      _
    %114 = vsyncpa [#allocation4], 1

</llo_original>
